<compile_context>
chip_gen: v5e
topology: v5e:2x2
jax: 0.10.0
libtpu: 0.0.40
codegen_flags: <defaults>
</compile_context>

<pallas_src>
import jax
import jax.numpy as jnp
from jax.experimental import pallas as pl
from jax.experimental.pallas import tpu as pltpu

D_IN = 28 * 28        # 784
D_IN_PAD = 896        # 7 * 128  (K padding for layer 1)
D_HID = 64
D_OUT = 10
D_OUT_PAD = 128       # lane-dense padded output width
TILE_B = 256          # batch tile: fills the 256-wide MXU on v6e/v7x,
                      # comfortably under v5e's 16 MiB scoped VMEM


def _round_up(n, m):
    return ((n + m - 1) // m) * m


def mlp_kernel(x_ref,
               w1_ref, b1_ref,
               w2_ref, b2_ref,
               w3_ref, b3_ref,
               w4_ref, b4_ref,
               o_ref):
    # Layer 1: (TILE_B, 896) bf16 @ (896, 64) bf16 -> f32 acc, +bias, ReLU
    h = jnp.dot(x_ref[...], w1_ref[...], preferred_element_type=jnp.float32)
    h = jnp.maximum(h + b1_ref[...], 0.0).astype(jnp.bfloat16)

    # Layer 2: (TILE_B, 64) @ (64, 64)
    h = jnp.dot(h, w2_ref[...], preferred_element_type=jnp.float32)
    h = jnp.maximum(h + b2_ref[...], 0.0).astype(jnp.bfloat16)

    # Layer 3: (TILE_B, 64) @ (64, 64)
    h = jnp.dot(h, w3_ref[...], preferred_element_type=jnp.float32)
    h = jnp.maximum(h + b3_ref[...], 0.0).astype(jnp.bfloat16)

    # Layer 4: (TILE_B, 64) @ (64, 128) + (1, 128) -> lane-dense store
    out = jnp.dot(h, w4_ref[...], preferred_element_type=jnp.float32) + b4_ref[...]
    o_ref[...] = out.astype(o_ref.dtype)


def net_forward(x, params, tile_b=TILE_B):
    """x: (B, 784) float32.  params: dict of (in,out) f32 weights and (1,out) f32 biases."""
    B = x.shape[0]
    # bf16 sublane packing is 16-deep; keep the batch tile a multiple of 16
    # (small batches just get one full-array tile).
    tile_b = min(tile_b, _round_up(B, 16))
    b_pad = _round_up(B, tile_b)

    # Input: cast to bf16, pad batch -> b_pad and K 784 -> 896 with zeros.
    x_p = jnp.zeros((b_pad, D_IN_PAD), jnp.bfloat16)
    x_p = x_p.at[:B, :D_IN].set(x.astype(jnp.bfloat16))

    # Weights in bf16; w1 zero-padded on K, w4/b4 zero-padded to 128 out cols.
    w1 = jnp.zeros((D_IN_PAD, D_HID), jnp.bfloat16)
    w1 = w1.at[:D_IN, :].set(params["w1"].astype(jnp.bfloat16))
    w2 = params["w2"].astype(jnp.bfloat16)
    w3 = params["w3"].astype(jnp.bfloat16)
    w4 = jnp.zeros((D_HID, D_OUT_PAD), jnp.bfloat16)
    w4 = w4.at[:, :D_OUT].set(params["w4"].astype(jnp.bfloat16))

    b1 = params["b1"]
    b2 = params["b2"]
    b3 = params["b3"]
    b4 = jnp.zeros((1, D_OUT_PAD), jnp.float32).at[:, :D_OUT].set(params["b4"])

    resident = lambda i: (0, 0)   # weights/biases: same block every step -> stay in VMEM

    out = pl.pallas_call(
        mlp_kernel,
        out_shape=jax.ShapeDtypeStruct((b_pad, D_OUT_PAD), jnp.float32),
        grid_spec=pltpu.PrefetchScalarGridSpec(
            num_scalar_prefetch=0,
            grid=(b_pad // tile_b,),
            in_specs=[
                pl.BlockSpec((tile_b, D_IN_PAD), lambda i: (i, 0)),     # x tile (pipelined)
                pl.BlockSpec((D_IN_PAD, D_HID), resident),              # w1
                pl.BlockSpec((1, D_HID), resident),                     # b1
                pl.BlockSpec((D_HID, D_HID), resident),                 # w2
                pl.BlockSpec((1, D_HID), resident),                     # b2
                pl.BlockSpec((D_HID, D_HID), resident),                 # w3
                pl.BlockSpec((1, D_HID), resident),                     # b3
                pl.BlockSpec((D_HID, D_OUT_PAD), resident),             # w4 (padded)
                pl.BlockSpec((1, D_OUT_PAD), resident),                 # b4 (padded)
            ],
            out_specs=pl.BlockSpec((tile_b, D_OUT_PAD), lambda i: (i, 0)),
        ),
        compiler_params=pltpu.CompilerParams(
            dimension_semantics=("parallel",)),                          # 2 TCs on v7x
    )(x_p, w1, b1, w2, b2, w3, b3, w4, b4)

    # Strip batch padding and the zero-padded logit columns.
    return out[:B, :D_OUT]


def init_params(key):
    """Deterministic init mirroring nn.Linear shapes (stored transposed: (in, out))."""
    dims = [(D_IN, D_HID), (D_HID, D_HID), (D_HID, D_HID), (D_HID, D_OUT)]
    params = {}
    for idx, (fan_in, fan_out) in enumerate(dims, start=1):
        key, kw, kb = jax.random.split(key, 3)
        bound = 1.0 / (fan_in ** 0.5)  # PyTorch Linear default uniform bound
        params[f"w{idx}"] = jax.random.uniform(
            kw, (fan_in, fan_out), jnp.float32, -bound, bound)
        params[f"b{idx}"] = jax.random.uniform(
            kb, (1, fan_out), jnp.float32, -bound, bound)
    return params


def reference_forward(x, params):
    """Pure-JAX f32 reference (exact forward semantics of the PyTorch module)."""
    h = jnp.maximum(x @ params["w1"] + params["b1"], 0.0)
    h = jnp.maximum(h @ params["w2"] + params["b2"], 0.0)
    h = jnp.maximum(h @ params["w3"] + params["b3"], 0.0)
    return h @ params["w4"] + params["b4"]


if __name__ == "__main__":
    key = jax.random.PRNGKey(0)
    kx, kp = jax.random.split(key)

    B = 8  # small batch
    x = jax.random.normal(kx, (B, D_IN), jnp.float32)
    params = init_params(kp)

    out = net_forward(x, params)
    out = jax.block_until_ready(out)

    ref = reference_forward(x, params)
    assert out.shape == (B, D_OUT)
    # bf16 inputs/weights with f32 accumulation: loosened tolerance vs f32 ref.
    assert jnp.allclose(out, ref, atol=5e-2, rtol=5e-2), (
        float(jnp.max(jnp.abs(out - ref))))

    print("KERNEL_OK")
</pallas_src>

<mosaic_0001>
module attributes {stable_mosaic.version = 11 : i64} {
  func.func @mlp_kernel(%arg0: i32, %arg1: memref<16x896xbf16, #tpu.memory_space<vmem>>, %arg2: memref<896x64xbf16, #tpu.memory_space<vmem>>, %arg3: memref<1x64xf32, #tpu.memory_space<vmem>>, %arg4: memref<64x64xbf16, #tpu.memory_space<vmem>>, %arg5: memref<1x64xf32, #tpu.memory_space<vmem>>, %arg6: memref<64x64xbf16, #tpu.memory_space<vmem>>, %arg7: memref<1x64xf32, #tpu.memory_space<vmem>>, %arg8: memref<64x128xbf16, #tpu.memory_space<vmem>>, %arg9: memref<1x128xf32, #tpu.memory_space<vmem>>, %arg10: memref<16x128xf32, #tpu.memory_space<vmem>>) attributes {dimension_semantics = [#tpu.dimension_semantics<parallel>], iteration_bounds = array<i64: 1>, scalar_prefetch = 0 : i64, scratch_operands = 0 : i64, tpu.core_type = #tpu.core_type<tc>, window_params = [{transform_indices = @transform_0, window_bounds = array<i64: 16, 896>}, {pipeline_mode = #tpu.pipeline_mode<synchronous>, transform_indices = @transform_1, window_bounds = array<i64: 896, 64>}, {pipeline_mode = #tpu.pipeline_mode<synchronous>, transform_indices = @transform_2, window_bounds = array<i64: 1, 64>}, {pipeline_mode = #tpu.pipeline_mode<synchronous>, transform_indices = @transform_3, window_bounds = array<i64: 64, 64>}, {pipeline_mode = #tpu.pipeline_mode<synchronous>, transform_indices = @transform_4, window_bounds = array<i64: 1, 64>}, {pipeline_mode = #tpu.pipeline_mode<synchronous>, transform_indices = @transform_5, window_bounds = array<i64: 64, 64>}, {pipeline_mode = #tpu.pipeline_mode<synchronous>, transform_indices = @transform_6, window_bounds = array<i64: 1, 64>}, {pipeline_mode = #tpu.pipeline_mode<synchronous>, transform_indices = @transform_7, window_bounds = array<i64: 64, 128>}, {pipeline_mode = #tpu.pipeline_mode<synchronous>, transform_indices = @transform_8, window_bounds = array<i64: 1, 128>}, {transform_indices = @transform_9, window_bounds = array<i64: 16, 128>}]} {
    %c0 = arith.constant 0 : index
    %c0_0 = arith.constant 0 : index
    %0 = vector.load %arg1[%c0, %c0_0] : memref<16x896xbf16, #tpu.memory_space<vmem>>, vector<16x896xbf16>
    %c0_1 = arith.constant 0 : index
    %c0_2 = arith.constant 0 : index
    %1 = vector.load %arg2[%c0_1, %c0_2] : memref<896x64xbf16, #tpu.memory_space<vmem>>, vector<896x64xbf16>
    %cst = arith.constant dense<0.000000e+00> : vector<16x64xf32>
    %2 = tpu.matmul %0, %1, %cst {dimension_numbers = #tpu.dot_dimension_numbers<[1], [0], [0], [1], [0, 0, 1, 1], [], []>} : vector<16x896xbf16>, vector<896x64xbf16>, vector<16x64xf32> -> vector<16x64xf32>
    %c0_3 = arith.constant 0 : index
    %c0_4 = arith.constant 0 : index
    %3 = vector.load %arg3[%c0_3, %c0_4] : memref<1x64xf32, #tpu.memory_space<vmem>>, vector<1x64xf32>
    %4 = vector.broadcast %3 : vector<1x64xf32> to vector<16x64xf32>
    %5 = arith.addf %2, %4 : vector<16x64xf32>
    %cst_5 = arith.constant 0.000000e+00 : f32
    %6 = vector.broadcast %cst_5 : f32 to vector<16x64xf32>
    %7 = arith.maximumf %5, %6 : vector<16x64xf32>
    %8 = arith.truncf %7 : vector<16x64xf32> to vector<16x64xbf16>
    %c0_6 = arith.constant 0 : index
    %c0_7 = arith.constant 0 : index
    %9 = vector.load %arg4[%c0_6, %c0_7] : memref<64x64xbf16, #tpu.memory_space<vmem>>, vector<64x64xbf16>
    %cst_8 = arith.constant dense<0.000000e+00> : vector<16x64xf32>
    %10 = tpu.matmul %8, %9, %cst_8 {dimension_numbers = #tpu.dot_dimension_numbers<[1], [0], [0], [1], [0, 0, 1, 1], [], []>} : vector<16x64xbf16>, vector<64x64xbf16>, vector<16x64xf32> -> vector<16x64xf32>
    %c0_9 = arith.constant 0 : index
    %c0_10 = arith.constant 0 : index
    %11 = vector.load %arg5[%c0_9, %c0_10] : memref<1x64xf32, #tpu.memory_space<vmem>>, vector<1x64xf32>
    %12 = vector.broadcast %11 : vector<1x64xf32> to vector<16x64xf32>
    %13 = arith.addf %10, %12 : vector<16x64xf32>
    %cst_11 = arith.constant 0.000000e+00 : f32
    %14 = vector.broadcast %cst_11 : f32 to vector<16x64xf32>
    %15 = arith.maximumf %13, %14 : vector<16x64xf32>
    %16 = arith.truncf %15 : vector<16x64xf32> to vector<16x64xbf16>
    %c0_12 = arith.constant 0 : index
    %c0_13 = arith.constant 0 : index
    %17 = vector.load %arg6[%c0_12, %c0_13] : memref<64x64xbf16, #tpu.memory_space<vmem>>, vector<64x64xbf16>
    %cst_14 = arith.constant dense<0.000000e+00> : vector<16x64xf32>
    %18 = tpu.matmul %16, %17, %cst_14 {dimension_numbers = #tpu.dot_dimension_numbers<[1], [0], [0], [1], [0, 0, 1, 1], [], []>} : vector<16x64xbf16>, vector<64x64xbf16>, vector<16x64xf32> -> vector<16x64xf32>
    %c0_15 = arith.constant 0 : index
    %c0_16 = arith.constant 0 : index
    %19 = vector.load %arg7[%c0_15, %c0_16] : memref<1x64xf32, #tpu.memory_space<vmem>>, vector<1x64xf32>
    %20 = vector.broadcast %19 : vector<1x64xf32> to vector<16x64xf32>
    %21 = arith.addf %18, %20 : vector<16x64xf32>
    %cst_17 = arith.constant 0.000000e+00 : f32
    %22 = vector.broadcast %cst_17 : f32 to vector<16x64xf32>
    %23 = arith.maximumf %21, %22 : vector<16x64xf32>
    %24 = arith.truncf %23 : vector<16x64xf32> to vector<16x64xbf16>
    %c0_18 = arith.constant 0 : index
    %c0_19 = arith.constant 0 : index
    %25 = vector.load %arg8[%c0_18, %c0_19] : memref<64x128xbf16, #tpu.memory_space<vmem>>, vector<64x128xbf16>
    %cst_20 = arith.constant dense<0.000000e+00> : vector<16x128xf32>
    %26 = tpu.matmul %24, %25, %cst_20 {dimension_numbers = #tpu.dot_dimension_numbers<[1], [0], [0], [1], [0, 0, 1, 1], [], []>} : vector<16x64xbf16>, vector<64x128xbf16>, vector<16x128xf32> -> vector<16x128xf32>
    %c0_21 = arith.constant 0 : index
    %c0_22 = arith.constant 0 : index
    %27 = vector.load %arg9[%c0_21, %c0_22] : memref<1x128xf32, #tpu.memory_space<vmem>>, vector<1x128xf32>
    %28 = vector.broadcast %27 : vector<1x128xf32> to vector<16x128xf32>
    %29 = arith.addf %26, %28 : vector<16x128xf32>
    %c0_23 = arith.constant 0 : index
    %c0_24 = arith.constant 0 : index
    %30 = vector.load %arg10[%c0_23, %c0_24] : memref<16x128xf32, #tpu.memory_space<vmem>>, vector<16x128xf32>
    tpu.vector_store %arg10[%c0_23, %c0_24], %29 {strides = array<i32>} : memref<16x128xf32, #tpu.memory_space<vmem>>, vector<16x128xf32>,
    return
  }
  func.func @transform_0(%arg0: i32) -> (i32, i32) {
    %c0_i32 = arith.constant 0 : i32
    %c0_i32_0 = arith.constant 0 : i32
    return %arg0, %c0_i32 : i32, i32
  }
  func.func @transform_1(%arg0: i32) -> (i32, i32) {
    %c0_i32 = arith.constant 0 : i32
    %c0_i32_0 = arith.constant 0 : i32
    %c0_i32_1 = arith.constant 0 : i32
    return %c0_i32, %c0_i32_0 : i32, i32
  }
  func.func @transform_2(%arg0: i32) -> (i32, i32) {
    %c0_i32 = arith.constant 0 : i32
    %c0_i32_0 = arith.constant 0 : i32
    %c0_i32_1 = arith.constant 0 : i32
    return %c0_i32, %c0_i32_0 : i32, i32
  }
  func.func @transform_3(%arg0: i32) -> (i32, i32) {
    %c0_i32 = arith.constant 0 : i32
    %c0_i32_0 = arith.constant 0 : i32
    %c0_i32_1 = arith.constant 0 : i32
    return %c0_i32, %c0_i32_0 : i32, i32
  }
  func.func @transform_4(%arg0: i32) -> (i32, i32) {
    %c0_i32 = arith.constant 0 : i32
    %c0_i32_0 = arith.constant 0 : i32
    %c0_i32_1 = arith.constant 0 : i32
    return %c0_i32, %c0_i32_0 : i32, i32
  }
  func.func @transform_5(%arg0: i32) -> (i32, i32) {
    %c0_i32 = arith.constant 0 : i32
    %c0_i32_0 = arith.constant 0 : i32
    %c0_i32_1 = arith.constant 0 : i32
    return %c0_i32, %c0_i32_0 : i32, i32
  }
  func.func @transform_6(%arg0: i32) -> (i32, i32) {
    %c0_i32 = arith.constant 0 : i32
    %c0_i32_0 = arith.constant 0 : i32
    %c0_i32_1 = arith.constant 0 : i32
    return %c0_i32, %c0_i32_0 : i32, i32
  }
  func.func @transform_7(%arg0: i32) -> (i32, i32) {
    %c0_i32 = arith.constant 0 : i32
    %c0_i32_0 = arith.constant 0 : i32
    %c0_i32_1 = arith.constant 0 : i32
    return %c0_i32, %c0_i32_0 : i32, i32
  }
  func.func @transform_8(%arg0: i32) -> (i32, i32) {
    %c0_i32 = arith.constant 0 : i32
    %c0_i32_0 = arith.constant 0 : i32
    %c0_i32_1 = arith.constant 0 : i32
    return %c0_i32, %c0_i32_0 : i32, i32
  }
  func.func @transform_9(%arg0: i32) -> (i32, i32) {
    %c0_i32 = arith.constant 0 : i32
    %c0_i32_0 = arith.constant 0 : i32
    return %arg0, %c0_i32 : i32, i32
  }
}

</mosaic_0001>

<llo_original>
// kernel: tpu_custom_call.1
$region0: #{tpu_custom_call.1}
  #allocation0 [shape = 'u32[]', space=smem, size = 0x4, offset = 0x4, fixed_abs, tag = 'smem constant byte address 0x4 - core index']
  #allocation1 [shape = 'u32[72,128]{1,0:T(1,128)}', space=vmem, size = 0x9000, scoped, tag = 'internal scratch']
  %s0 = inlined_call_operand.vmem [shape: bf16[16,896], index: 0, kind: input, shape index: {}]
  %s1 = inlined_call_operand.vmem [shape: bf16[896,64], index: 1, kind: input, shape index: {}]
  %s2 = inlined_call_operand.vmem [shape: f32[1,64], index: 2, kind: input, shape index: {}]
  %s3 = inlined_call_operand.vmem [shape: bf16[64,64], index: 3, kind: input, shape index: {}]
  %s4 = inlined_call_operand.vmem [shape: f32[1,64], index: 4, kind: input, shape index: {}]
  %s5 = inlined_call_operand.vmem [shape: bf16[64,64], index: 5, kind: input, shape index: {}]
  %s6 = inlined_call_operand.vmem [shape: f32[1,64], index: 6, kind: input, shape index: {}]
  %s7 = inlined_call_operand.vmem [shape: bf16[64,128], index: 7, kind: input, shape index: {}]
  %s8 = inlined_call_operand.vmem [shape: f32[1,128], index: 8, kind: input, shape index: {}]
  %s9 = inlined_call_operand.hbm [shape: f32[16,128], index: 9, kind: output, shape index: {}]
  %s10 = sld [smem:[#allocation0]]
  $region46: #{tpu_custom_call.1} parent=0
    _
  %s12 = ssub.s32 1, %s10
  %s13 = scalar_select 0, %s12, %s10
  $region1: #{tpu_custom_call.1} parent=0
    #allocation2 [shape = 'u8[8192]{0}', space=vmem, size = 0x2000, scoped, tag = 'output window, operand 0, single buffered']
    #allocation3 [shape = 's32[1]{0}', space=sflag, size = 0x4, scoped, tag = 'scoped memory for tpu_custom_call.1']
    %14 = vsyncpa [#allocation3], 0
    // Predicated region
    $region2: #{tpu_custom_call.1} parent=1 // pred_check
      _
    $region3: #{tpu_custom_call.1} parent=1 // pred_check_branch
      %16 = sbr.rel (0) target = $region5
    $region4: #{tpu_custom_call.1} parent=1 // pred_region
      _
    $region5: #{tpu_custom_call.1} parent=1 // pred_fallthru
      _
    // Predicated region
    $region6: #{tpu_custom_call.1} parent=1 // pred_check
      _
    $region7: #{tpu_custom_call.1} parent=1 // pred_check_branch
      %18 = sbr.rel (0) target = $region9
    $region8: #{tpu_custom_call.1} parent=1 // pred_region
      _
    $region9: #{tpu_custom_call.1} parent=1 // pred_fallthru
      _
    // Predicated region
    $region10: #{tpu_custom_call.1} parent=1 // pred_check
      _
    $region11: #{tpu_custom_call.1} parent=1 // pred_check_branch
      %20 = sbr.rel (0) target = $region13
    $region12: #{tpu_custom_call.1} parent=1 // pred_region
      _
    $region13: #{tpu_custom_call.1} parent=1 // pred_fallthru
      _
    // Predicated region
    $region14: #{tpu_custom_call.1} parent=1 // pred_check
      _
    $region15: #{tpu_custom_call.1} parent=1 // pred_check_branch
      %22 = sbr.rel (0) target = $region17
    $region16: #{tpu_custom_call.1} parent=1 // pred_region
      _
    $region17: #{tpu_custom_call.1} parent=1 // pred_fallthru
      _
    // Predicated region
    $region18: #{tpu_custom_call.1} parent=1 // pred_check
      _
    $region19: #{tpu_custom_call.1} parent=1 // pred_check_branch
      %24 = sbr.rel (0) target = $region21
    $region20: #{tpu_custom_call.1} parent=1 // pred_region
      _
    $region21: #{tpu_custom_call.1} parent=1 // pred_fallthru
      _
    // Predicated region
    $region22: #{tpu_custom_call.1} parent=1 // pred_check
      _
    $region23: #{tpu_custom_call.1} parent=1 // pred_check_branch
      %26 = sbr.rel (0) target = $region25
    $region24: #{tpu_custom_call.1} parent=1 // pred_region
      _
    $region25: #{tpu_custom_call.1} parent=1 // pred_fallthru
      _
    // Predicated region
    $region26: #{tpu_custom_call.1} parent=1 // pred_check
      _
    $region27: #{tpu_custom_call.1} parent=1 // pred_check_branch
      %28 = sbr.rel (0) target = $region29
    $region28: #{tpu_custom_call.1} parent=1 // pred_region
      _
    $region29: #{tpu_custom_call.1} parent=1 // pred_fallthru
      _
    // Predicated region
    $region30: #{tpu_custom_call.1} parent=1 // pred_check
      _
    $region31: #{tpu_custom_call.1} parent=1 // pred_check_branch
      %30 = sbr.rel (0) target = $region33
    $region32: #{tpu_custom_call.1} parent=1 // pred_region
      _
    $region33: #{tpu_custom_call.1} parent=1 // pred_fallthru
      _
    // Predicated region
    $region34: #{tpu_custom_call.1} parent=1 // pred_check
      _
    $region35: #{tpu_custom_call.1} parent=1 // pred_check_branch
      %32 = sbr.rel (0) target = $region37
    $region36: #{tpu_custom_call.1} parent=1 // pred_region
      _
    $region37: #{tpu_custom_call.1} parent=1 // pred_fallthru
      _
    %v34 = vld [vmem:[%s0] sm:$0xff]
    %v35 = vld [vmem:[%s0 + $0x8] sm:$0xff]
    %v36 = vld [vmem:[%s0 + $0x10] sm:$0xff]
    %v37 = vld [vmem:[%s0 + $0x18] sm:$0xf]
    %v38 = vld [vmem:[%s0 + $0x1c] sm:$0xff]
    %v39 = vld [vmem:[%s0 + $0x24] sm:$0xff]
    %v40 = vld [vmem:[%s0 + $0x2c] sm:$0xff]
    %v41 = vld [vmem:[%s0 + $0x34] sm:$0xf]
    %v42 = vld [vmem:[%s1] sm:$0xf]
    %v43 = vld [vmem:[%s1 + $0x4] sm:$0xf]
    %v44 = vld [vmem:[%s1 + $0x8] sm:$0xf]
    %v45 = vld [vmem:[%s1 + $0xc] sm:$0xf]
    %v46 = vld [vmem:[%s1 + $0x10] sm:$0xf]
    %v47 = vld [vmem:[%s1 + $0x14] sm:$0xf]
    %v48 = vld [vmem:[%s1 + $0x18] sm:$0xf]
    %v49 = vld [vmem:[%s1 + $0x1c] sm:$0xf]
    %v50 = vld [vmem:[%s1 + $0x20] sm:$0xf]
    %v51 = vld [vmem:[%s1 + $0x24] sm:$0xf]
    %v52 = vld [vmem:[%s1 + $0x28] sm:$0xf]
    %v53 = vld [vmem:[%s1 + $0x2c] sm:$0xf]
    %v54 = vld [vmem:[%s1 + $0x30] sm:$0xf]
    %v55 = vld [vmem:[%s1 + $0x34] sm:$0xf]
    %v56 = vld [vmem:[%s1 + $0x38] sm:$0xf]
    %v57 = vld [vmem:[%s1 + $0x3c] sm:$0xf]
    %v58 = vld [vmem:[%s1 + $0x40] sm:$0xf]
    %v59 = vld [vmem:[%s1 + $0x44] sm:$0xf]
    %v60 = vld [vmem:[%s1 + $0x48] sm:$0xf]
    %v61 = vld [vmem:[%s1 + $0x4c] sm:$0xf]
    %v62 = vld [vmem:[%s1 + $0x50] sm:$0xf]
    %v63 = vld [vmem:[%s1 + $0x54] sm:$0xf]
    %v64 = vld [vmem:[%s1 + $0x58] sm:$0xf]
    %v65 = vld [vmem:[%s1 + $0x5c] sm:$0xf]
    %v66 = vld [vmem:[%s1 + $0x60] sm:$0xf]
    %v67 = vld [vmem:[%s1 + $0x64] sm:$0xf]
    %v68 = vld [vmem:[%s1 + $0x68] sm:$0xf]
    %v69 = vld [vmem:[%s1 + $0x6c] sm:$0xf]
    %v70 = vld [vmem:[%s1 + $0x70] sm:$0xf]
    %v71 = vld [vmem:[%s1 + $0x74] sm:$0xf]
    %v72 = vld [vmem:[%s1 + $0x78] sm:$0xf]
    %v73 = vld [vmem:[%s1 + $0x7c] sm:$0xf]
    %v74 = vld [vmem:[%s1 + $0x80] sm:$0xf]
    %v75 = vld [vmem:[%s1 + $0x84] sm:$0xf]
    %v76 = vld [vmem:[%s1 + $0x88] sm:$0xf]
    %v77 = vld [vmem:[%s1 + $0x8c] sm:$0xf]
    %v78 = vld [vmem:[%s1 + $0x90] sm:$0xf]
    %v79 = vld [vmem:[%s1 + $0x94] sm:$0xf]
    %v80 = vld [vmem:[%s1 + $0x98] sm:$0xf]
    %v81 = vld [vmem:[%s1 + $0x9c] sm:$0xf]
    %v82 = vld [vmem:[%s1 + $0xa0] sm:$0xf]
    %v83 = vld [vmem:[%s1 + $0xa4] sm:$0xf]
    %v84 = vld [vmem:[%s1 + $0xa8] sm:$0xf]
    %v85 = vld [vmem:[%s1 + $0xac] sm:$0xf]
    %v86 = vld [vmem:[%s1 + $0xb0] sm:$0xf]
    %v87 = vld [vmem:[%s1 + $0xb4] sm:$0xf]
    %v88 = vld [vmem:[%s1 + $0xb8] sm:$0xf]
    %v89 = vld [vmem:[%s1 + $0xbc] sm:$0xf]
    %v90 = vld [vmem:[%s1 + $0xc0] sm:$0xf]
    %v91 = vld [vmem:[%s1 + $0xc4] sm:$0xf]
    %v92 = vld [vmem:[%s1 + $0xc8] sm:$0xf]
    %v93 = vld [vmem:[%s1 + $0xcc] sm:$0xf]
    %v94 = vld [vmem:[%s1 + $0xd0] sm:$0xf]
    %v95 = vld [vmem:[%s1 + $0xd4] sm:$0xf]
    %v96 = vld [vmem:[%s1 + $0xd8] sm:$0xf]
    %v97 = vld [vmem:[%s1 + $0xdc] sm:$0xf]
    %v98 = vld [vmem:[%s1 + $0xe0] sm:$0xf]
    %v99 = vld [vmem:[%s1 + $0xe4] sm:$0xf]
    %v100 = vld [vmem:[%s1 + $0xe8] sm:$0xf]
    %v101 = vld [vmem:[%s1 + $0xec] sm:$0xf]
    %v102 = vld [vmem:[%s1 + $0xf0] sm:$0xf]
    %v103 = vld [vmem:[%s1 + $0xf4] sm:$0xf]
    %v104 = vld [vmem:[%s1 + $0xf8] sm:$0xf]
    %v105 = vld [vmem:[%s1 + $0xfc] sm:$0xf]
    %v106 = vld [vmem:[%s1 + $0x100] sm:$0xf]
    %v107 = vld [vmem:[%s1 + $0x104] sm:$0xf]
    %v108 = vld [vmem:[%s1 + $0x108] sm:$0xf]
    %v109 = vld [vmem:[%s1 + $0x10c] sm:$0xf]
    %v110 = vld [vmem:[%s1 + $0x110] sm:$0xf]
    %v111 = vld [vmem:[%s1 + $0x114] sm:$0xf]
    %v112 = vld [vmem:[%s1 + $0x118] sm:$0xf]
    %v113 = vld [vmem:[%s1 + $0x11c] sm:$0xf]
    %v114 = vld [vmem:[%s1 + $0x120] sm:$0xf]
    %v115 = vld [vmem:[%s1 + $0x124] sm:$0xf]
    %v116 = vld [vmem:[%s1 + $0x128] sm:$0xf]
    %v117 = vld [vmem:[%s1 + $0x12c] sm:$0xf]
    %v118 = vld [vmem:[%s1 + $0x130] sm:$0xf]
    %v119 = vld [vmem:[%s1 + $0x134] sm:$0xf]
    %v120 = vld [vmem:[%s1 + $0x138] sm:$0xf]
    %v121 = vld [vmem:[%s1 + $0x13c] sm:$0xf]
    %v122 = vld [vmem:[%s1 + $0x140] sm:$0xf]
    %v123 = vld [vmem:[%s1 + $0x144] sm:$0xf]
    %v124 = vld [vmem:[%s1 + $0x148] sm:$0xf]
    %v125 = vld [vmem:[%s1 + $0x14c] sm:$0xf]
    %v126 = vld [vmem:[%s1 + $0x150] sm:$0xf]
    %v127 = vld [vmem:[%s1 + $0x154] sm:$0xf]
    %v128 = vld [vmem:[%s1 + $0x158] sm:$0xf]
    %v129 = vld [vmem:[%s1 + $0x15c] sm:$0xf]
    %v130 = vld [vmem:[%s1 + $0x160] sm:$0xf]
    %v131 = vld [vmem:[%s1 + $0x164] sm:$0xf]
    %v132 = vld [vmem:[%s1 + $0x168] sm:$0xf]
    %v133 = vld [vmem:[%s1 + $0x16c] sm:$0xf]
    %v134 = vld [vmem:[%s1 + $0x170] sm:$0xf]
    %v135 = vld [vmem:[%s1 + $0x174] sm:$0xf]
    %v136 = vld [vmem:[%s1 + $0x178] sm:$0xf]
    %v137 = vld [vmem:[%s1 + $0x17c] sm:$0xf]
    %v138 = vld [vmem:[%s1 + $0x180] sm:$0xf]
    %v139 = vld [vmem:[%s1 + $0x184] sm:$0xf]
    %v140 = vld [vmem:[%s1 + $0x188] sm:$0xf]
    %v141 = vld [vmem:[%s1 + $0x18c] sm:$0xf]
    %v142 = vld [vmem:[%s1 + $0x190] sm:$0xf]
    %v143 = vld [vmem:[%s1 + $0x194] sm:$0xf]
    %v144 = vld [vmem:[%s1 + $0x198] sm:$0xf]
    %v145 = vld [vmem:[%s1 + $0x19c] sm:$0xf]
    %v146 = vld [vmem:[%s1 + $0x1a0] sm:$0xf]
    %v147 = vld [vmem:[%s1 + $0x1a4] sm:$0xf]
    %v148 = vld [vmem:[%s1 + $0x1a8] sm:$0xf]
    %v149 = vld [vmem:[%s1 + $0x1ac] sm:$0xf]
    %v150 = vld [vmem:[%s1 + $0x1b0] sm:$0xf]
    %v151 = vld [vmem:[%s1 + $0x1b4] sm:$0xf]
    %v152 = vld [vmem:[%s1 + $0x1b8] sm:$0xf]
    %v153 = vld [vmem:[%s1 + $0x1bc] sm:$0xf]
    %v154 = vld [vmem:[%s2] sm:$0x1]
    %v156 = vperm.slane %v154, 0
    %v166 = vunpack.c.l.b16 %v34
    %v167 = vunpack.c.h.b16 %v34
    %v168 = vunpack.c.l.b16 %v35
    %v169 = vunpack.c.h.b16 %v35
    %v170 = vunpack.c.l.b16 %v36
    %v171 = vunpack.c.h.b16 %v36
    %v172 = vunpack.c.l.b16 %v37
    %v173 = vunpack.c.l.b16 %v38
    %v174 = vunpack.c.h.b16 %v38
    %v175 = vunpack.c.l.b16 %v39
    %v176 = vunpack.c.h.b16 %v39
    %v177 = vunpack.c.l.b16 %v40
    %v178 = vunpack.c.h.b16 %v40
    %v179 = vunpack.c.l.b16 %v41
    %v180 = vpack.c.b16 %v173, %v166
    %v181 = vpack.c.b16 %v174, %v167
    %v182 = vpack.c.b16 %v175, %v168
    %v183 = vpack.c.b16 %v176, %v169
    %v184 = vpack.c.b16 %v177, %v170
    %v185 = vpack.c.b16 %v178, %v171
    %v186 = vpack.c.b16 %v179, %v172
    %v306 = vunpack.c.l.b16 %v42
    %v307 = vunpack.c.l.b16 %v43
    %v308 = vunpack.c.l.b16 %v44
    %v309 = vunpack.c.l.b16 %v45
    %v310 = vunpack.c.l.b16 %v46
    %v311 = vunpack.c.l.b16 %v47
    %v312 = vunpack.c.l.b16 %v48
    %v313 = vunpack.c.l.b16 %v49
    %v314 = vunpack.c.l.b16 %v50
    %v315 = vunpack.c.l.b16 %v51
    %v316 = vunpack.c.l.b16 %v52
    %v317 = vunpack.c.l.b16 %v53
    %v318 = vunpack.c.l.b16 %v54
    %v319 = vunpack.c.l.b16 %v55
    %v320 = vunpack.c.l.b16 %v56
    %v321 = vunpack.c.l.b16 %v57
    %v322 = vunpack.c.l.b16 %v58
    %v323 = vunpack.c.l.b16 %v59
    %v324 = vunpack.c.l.b16 %v60
    %v325 = vunpack.c.l.b16 %v61
    %v326 = vunpack.c.l.b16 %v62
    %v327 = vunpack.c.l.b16 %v63
    %v328 = vunpack.c.l.b16 %v64
    %v329 = vunpack.c.l.b16 %v65
    %v330 = vunpack.c.l.b16 %v66
    %v331 = vunpack.c.l.b16 %v67
    %v332 = vunpack.c.l.b16 %v68
    %v333 = vunpack.c.l.b16 %v69
    %v334 = vunpack.c.l.b16 %v70
    %v335 = vunpack.c.l.b16 %v71
    %v336 = vunpack.c.l.b16 %v72
    %v337 = vunpack.c.l.b16 %v73
    %v338 = vunpack.c.l.b16 %v74
    %v339 = vunpack.c.l.b16 %v75
    %v340 = vunpack.c.l.b16 %v76
    %v341 = vunpack.c.l.b16 %v77
    %v342 = vunpack.c.l.b16 %v78
    %v343 = vunpack.c.l.b16 %v79
    %v344 = vunpack.c.l.b16 %v80
    %v345 = vunpack.c.l.b16 %v81
    %v346 = vunpack.c.l.b16 %v82
    %v347 = vunpack.c.l.b16 %v83
    %v348 = vunpack.c.l.b16 %v84
    %v349 = vunpack.c.l.b16 %v85
    %v350 = vunpack.c.l.b16 %v86
    %v351 = vunpack.c.l.b16 %v87
    %v352 = vunpack.c.l.b16 %v88
    %v353 = vunpack.c.l.b16 %v89
    %v354 = vunpack.c.l.b16 %v90
    %v355 = vunpack.c.l.b16 %v91
    %v356 = vunpack.c.l.b16 %v92
    %v357 = vunpack.c.l.b16 %v93
    %v358 = vunpack.c.l.b16 %v94
    %v359 = vunpack.c.l.b16 %v95
    %v360 = vunpack.c.l.b16 %v96
    %v361 = vunpack.c.l.b16 %v97
    %v362 = vunpack.c.l.b16 %v98
    %v363 = vunpack.c.l.b16 %v99
    %v364 = vunpack.c.l.b16 %v100
    %v365 = vunpack.c.l.b16 %v101
    %v366 = vunpack.c.l.b16 %v102
    %v367 = vunpack.c.l.b16 %v103
    %v368 = vunpack.c.l.b16 %v104
    %v369 = vunpack.c.l.b16 %v105
    %v370 = vunpack.c.l.b16 %v106
    %v371 = vunpack.c.l.b16 %v107
    %v372 = vunpack.c.l.b16 %v108
    %v373 = vunpack.c.l.b16 %v109
    %v374 = vunpack.c.l.b16 %v110
    %v375 = vunpack.c.l.b16 %v111
    %v376 = vunpack.c.l.b16 %v112
    %v377 = vunpack.c.l.b16 %v113
    %v378 = vunpack.c.l.b16 %v114
    %v379 = vunpack.c.l.b16 %v115
    %v380 = vunpack.c.l.b16 %v116
    %v381 = vunpack.c.l.b16 %v117
    %v382 = vunpack.c.l.b16 %v118
    %v383 = vunpack.c.l.b16 %v119
    %v384 = vunpack.c.l.b16 %v120
    %v385 = vunpack.c.l.b16 %v121
    %v386 = vunpack.c.l.b16 %v122
    %v387 = vunpack.c.l.b16 %v123
    %v388 = vunpack.c.l.b16 %v124
    %v389 = vunpack.c.l.b16 %v125
    %v390 = vunpack.c.l.b16 %v126
    %v391 = vunpack.c.l.b16 %v127
    %v392 = vunpack.c.l.b16 %v128
    %v393 = vunpack.c.l.b16 %v129
    %v394 = vunpack.c.l.b16 %v130
    %v395 = vunpack.c.l.b16 %v131
    %v396 = vunpack.c.l.b16 %v132
    %v397 = vunpack.c.l.b16 %v133
    %v398 = vunpack.c.l.b16 %v134
    %v399 = vunpack.c.l.b16 %v135
    %v400 = vunpack.c.l.b16 %v136
    %v401 = vunpack.c.l.b16 %v137
    %v402 = vunpack.c.l.b16 %v138
    %v403 = vunpack.c.l.b16 %v139
    %v404 = vunpack.c.l.b16 %v140
    %v405 = vunpack.c.l.b16 %v141
    %v406 = vunpack.c.l.b16 %v142
    %v407 = vunpack.c.l.b16 %v143
    %v408 = vunpack.c.l.b16 %v144
    %v409 = vunpack.c.l.b16 %v145
    %v410 = vunpack.c.l.b16 %v146
    %v411 = vunpack.c.l.b16 %v147
    %v412 = vunpack.c.l.b16 %v148
    %v413 = vunpack.c.l.b16 %v149
    %v414 = vunpack.c.l.b16 %v150
    %v415 = vunpack.c.l.b16 %v151
    %v416 = vunpack.c.l.b16 %v152
    %v417 = vunpack.c.l.b16 %v153
    %v418 = vpack.c.b16 %v307, %v306
    %v419 = vpack.c.b16 %v309, %v308
    %v420 = vpack.c.b16 %v311, %v310
    %v421 = vpack.c.b16 %v313, %v312
    %v422 = vpack.c.b16 %v315, %v314
    %v423 = vpack.c.b16 %v317, %v316
    %v424 = vpack.c.b16 %v319, %v318
    %v425 = vpack.c.b16 %v321, %v320
    %v426 = vpack.c.b16 %v323, %v322
    %v427 = vpack.c.b16 %v325, %v324
    %v428 = vpack.c.b16 %v327, %v326
    %v429 = vpack.c.b16 %v329, %v328
    %v430 = vpack.c.b16 %v331, %v330
    %v431 = vpack.c.b16 %v333, %v332
    %v432 = vpack.c.b16 %v335, %v334
    %v433 = vpack.c.b16 %v337, %v336
    %v434 = vpack.c.b16 %v339, %v338
    %v435 = vpack.c.b16 %v341, %v340
    %v436 = vpack.c.b16 %v343, %v342
    %v437 = vpack.c.b16 %v345, %v344
    %v438 = vpack.c.b16 %v347, %v346
    %v439 = vpack.c.b16 %v349, %v348
    %v440 = vpack.c.b16 %v351, %v350
    %v441 = vpack.c.b16 %v353, %v352
    %v442 = vpack.c.b16 %v355, %v354
    %v443 = vpack.c.b16 %v357, %v356
    %v444 = vpack.c.b16 %v359, %v358
    %v445 = vpack.c.b16 %v361, %v360
    %v446 = vpack.c.b16 %v363, %v362
    %v447 = vpack.c.b16 %v365, %v364
    %v448 = vpack.c.b16 %v367, %v366
    %v449 = vpack.c.b16 %v369, %v368
    %v450 = vpack.c.b16 %v371, %v370
    %v451 = vpack.c.b16 %v373, %v372
    %v452 = vpack.c.b16 %v375, %v374
    %v453 = vpack.c.b16 %v377, %v376
    %v454 = vpack.c.b16 %v379, %v378
    %v455 = vpack.c.b16 %v381, %v380
    %v456 = vpack.c.b16 %v383, %v382
    %v457 = vpack.c.b16 %v385, %v384
    %v458 = vpack.c.b16 %v387, %v386
    %v459 = vpack.c.b16 %v389, %v388
    %v460 = vpack.c.b16 %v391, %v390
    %v461 = vpack.c.b16 %v393, %v392
    %v462 = vpack.c.b16 %v395, %v394
    %v463 = vpack.c.b16 %v397, %v396
    %v464 = vpack.c.b16 %v399, %v398
    %v465 = vpack.c.b16 %v401, %v400
    %v466 = vpack.c.b16 %v403, %v402
    %v467 = vpack.c.b16 %v405, %v404
    %v468 = vpack.c.b16 %v407, %v406
    %v469 = vpack.c.b16 %v409, %v408
    %v470 = vpack.c.b16 %v411, %v410
    %v471 = vpack.c.b16 %v413, %v412
    %v472 = vpack.c.b16 %v415, %v414
    %v473 = vpack.c.b16 %v417, %v416
    %530 = vmatpush.bf16.msra.mxu0 %v425
    %531 = vmatpush.bf16.msra.mxu0 %v424
    %532 = vmatpush.bf16.msra.mxu0 %v423
    %533 = vmatpush.bf16.msra.mxu0 %v422
    %534 = vmatpush.bf16.msra.mxu0 %v421
    %535 = vmatpush.bf16.msra.mxu0 %v420
    %536 = vmatpush.bf16.msra.mxu0 %v419
    %537 = vmatpush.bf16.msra.mxu0 %v418
    %538 = vmatmul.bf16.gmra.mxu0 %v180
    %v539 = vpop.f32.mrf.mxu0
    %v540 = vadd.f32 %v156, %v539
    %v541 = vpop.f32.mrf.mxu0
    %v542 = vadd.f32 %v156, %v541
    %543 = vdwg.mxu0
    %544 = vmatpush.bf16.msra.mxu0 %v433
    %545 = vmatpush.bf16.msra.mxu0 %v432
    %546 = vmatpush.bf16.msra.mxu0 %v431
    %547 = vmatpush.bf16.msra.mxu0 %v430
    %548 = vmatpush.bf16.msra.mxu0 %v429
    %549 = vmatpush.bf16.msra.mxu0 %v428
    %550 = vmatpush.bf16.msra.mxu0 %v427
    %551 = vmatpush.bf16.msra.mxu0 %v426
    %552 = vmatmul.bf16.gmra.mxu0 %v181
    %v553 = vpop.f32.mrf.mxu0
    %v554 = vadd.f32 %v540, %v553
    %v555 = vpop.f32.mrf.mxu0
    %v556 = vadd.f32 %v542, %v555
    %557 = vdwg.mxu0
    %558 = vmatpush.bf16.msra.mxu0 %v441
    %559 = vmatpush.bf16.msra.mxu0 %v440
    %560 = vmatpush.bf16.msra.mxu0 %v439
    %561 = vmatpush.bf16.msra.mxu0 %v438
    %562 = vmatpush.bf16.msra.mxu0 %v437
    %563 = vmatpush.bf16.msra.mxu0 %v436
    %564 = vmatpush.bf16.msra.mxu0 %v435
    %565 = vmatpush.bf16.msra.mxu0 %v434
    %566 = vmatmul.bf16.gmra.mxu0 %v182
    %v567 = vpop.f32.mrf.mxu0
    %v568 = vadd.f32 %v554, %v567
    %v569 = vpop.f32.mrf.mxu0
    %v570 = vadd.f32 %v556, %v569
    %571 = vdwg.mxu0
    %572 = vmatpush.bf16.msra.mxu0 %v449
    %573 = vmatpush.bf16.msra.mxu0 %v448
    %574 = vmatpush.bf16.msra.mxu0 %v447
    %575 = vmatpush.bf16.msra.mxu0 %v446
    %576 = vmatpush.bf16.msra.mxu0 %v445
    %577 = vmatpush.bf16.msra.mxu0 %v444
    %578 = vmatpush.bf16.msra.mxu0 %v443
    %579 = vmatpush.bf16.msra.mxu0 %v442
    %580 = vmatmul.bf16.gmra.mxu0 %v183
    %v581 = vpop.f32.mrf.mxu0
    %v582 = vadd.f32 %v568, %v581
    %v583 = vpop.f32.mrf.mxu0
    %v584 = vadd.f32 %v570, %v583
    %585 = vdwg.mxu0
    %586 = vmatpush.bf16.msra.mxu0 %v457
    %587 = vmatpush.bf16.msra.mxu0 %v456
    %588 = vmatpush.bf16.msra.mxu0 %v455
    %589 = vmatpush.bf16.msra.mxu0 %v454
    %590 = vmatpush.bf16.msra.mxu0 %v453
    %591 = vmatpush.bf16.msra.mxu0 %v452
    %592 = vmatpush.bf16.msra.mxu0 %v451
    %593 = vmatpush.bf16.msra.mxu0 %v450
    %594 = vmatmul.bf16.gmra.mxu0 %v184
    %v595 = vpop.f32.mrf.mxu0
    %v596 = vadd.f32 %v582, %v595
    %v597 = vpop.f32.mrf.mxu0
    %v598 = vadd.f32 %v584, %v597
    %599 = vdwg.mxu0
    %600 = vmatpush.bf16.msra.mxu0 %v465
    %601 = vmatpush.bf16.msra.mxu0 %v464
    %602 = vmatpush.bf16.msra.mxu0 %v463
    %603 = vmatpush.bf16.msra.mxu0 %v462
    %604 = vmatpush.bf16.msra.mxu0 %v461
    %605 = vmatpush.bf16.msra.mxu0 %v460
    %606 = vmatpush.bf16.msra.mxu0 %v459
    %607 = vmatpush.bf16.msra.mxu0 %v458
    %608 = vmatmul.bf16.gmra.mxu0 %v185
    %v609 = vpop.f32.mrf.mxu0
    %v610 = vadd.f32 %v596, %v609
    %v611 = vpop.f32.mrf.mxu0
    %v612 = vadd.f32 %v598, %v611
    %613 = vdwg.mxu0
    %614 = vmatpush.bf16.msra.mxu0 %v473
    %615 = vmatpush.bf16.msra.mxu0 %v472
    %616 = vmatpush.bf16.msra.mxu0 %v471
    %617 = vmatpush.bf16.msra.mxu0 %v470
    %618 = vmatpush.bf16.msra.mxu0 %v469
    %619 = vmatpush.bf16.msra.mxu0 %v468
    %620 = vmatpush.bf16.msra.mxu0 %v467
    %621 = vmatpush.bf16.msra.mxu0 %v466
    %622 = vmatmul.bf16.gmra.mxu0 %v186
    %v623 = vpop.f32.mrf.mxu0
    %v624 = vadd.f32 %v610, %v623
    %v625 = vpop.f32.mrf.mxu0
    %v626 = vadd.f32 %v612, %v625
    %627 = vdwg.mxu0
    %v628 = vmax.f32 %v624, 0.0
    %v629 = vmax.f32 %v626, 0.0
    %v630 = vpack.c.bf16 %v629, %v628
    %v631 = vld [vmem:[%s3] sm:$0xf]
    %v632 = vld [vmem:[%s3 + $0x4] sm:$0xf]
    %v633 = vld [vmem:[%s3 + $0x8] sm:$0xf]
    %v634 = vld [vmem:[%s3 + $0xc] sm:$0xf]
    %v635 = vld [vmem:[%s3 + $0x10] sm:$0xf]
    %v636 = vld [vmem:[%s3 + $0x14] sm:$0xf]
    %v637 = vld [vmem:[%s3 + $0x18] sm:$0xf]
    %v638 = vld [vmem:[%s3 + $0x1c] sm:$0xf]
    %v639 = vld [vmem:[%s4] sm:$0x1]
    %v641 = vperm.slane %v639, 0
    %v651 = vunpack.c.l.b16 %v631
    %v652 = vunpack.c.l.b16 %v632
    %v653 = vunpack.c.l.b16 %v633
    %v654 = vunpack.c.l.b16 %v634
    %v655 = vunpack.c.l.b16 %v635
    %v656 = vunpack.c.l.b16 %v636
    %v657 = vunpack.c.l.b16 %v637
    %v658 = vunpack.c.l.b16 %v638
    %v659 = vpack.c.b16 %v652, %v651
    %v660 = vpack.c.b16 %v654, %v653
    %v661 = vpack.c.b16 %v656, %v655
    %v662 = vpack.c.b16 %v658, %v657
    %vm667 = vcmask 523264
    %v669 = vsel %vm667, %v630, 0
    %671 = vmatpush.bf16.msra.mxu0 0
    %672 = vmatpush.bf16.msra.mxu0 0
    %673 = vmatpush.bf16.msra.mxu0 0
    %674 = vmatpush.bf16.msra.mxu0 0
    %675 = vmatpush.bf16.msra.mxu0 %v662
    %676 = vmatpush.bf16.msra.mxu0 %v661
    %677 = vmatpush.bf16.msra.mxu0 %v660
    %678 = vmatpush.bf16.msra.mxu0 %v659
    %679 = vmatmul.bf16.gmra.mxu0 %v669
    %v680 = vpop.f32.mrf.mxu0
    %v681 = vadd.f32 %v641, %v680
    %v682 = vpop.f32.mrf.mxu0
    %v683 = vadd.f32 %v641, %v682
    %684 = vdwg.mxu0
    %v685 = vmax.f32 %v681, 0.0
    %v686 = vmax.f32 %v683, 0.0
    %v687 = vpack.c.bf16 %v686, %v685
    %v688 = vld [vmem:[%s5] sm:$0xf]
    %v689 = vld [vmem:[%s5 + $0x4] sm:$0xf]
    %v690 = vld [vmem:[%s5 + $0x8] sm:$0xf]
    %v691 = vld [vmem:[%s5 + $0xc] sm:$0xf]
    %v692 = vld [vmem:[%s5 + $0x10] sm:$0xf]
    %v693 = vld [vmem:[%s5 + $0x14] sm:$0xf]
    %v694 = vld [vmem:[%s5 + $0x18] sm:$0xf]
    %v695 = vld [vmem:[%s5 + $0x1c] sm:$0xf]
    %v696 = vld [vmem:[%s6] sm:$0x1]
    %v698 = vperm.slane %v696, 0
    %v708 = vunpack.c.l.b16 %v688
    %v709 = vunpack.c.l.b16 %v689
    %v710 = vunpack.c.l.b16 %v690
    %v711 = vunpack.c.l.b16 %v691
    %v712 = vunpack.c.l.b16 %v692
    %v713 = vunpack.c.l.b16 %v693
    %v714 = vunpack.c.l.b16 %v694
    %v715 = vunpack.c.l.b16 %v695
    %v716 = vpack.c.b16 %v709, %v708
    %v717 = vpack.c.b16 %v711, %v710
    %v718 = vpack.c.b16 %v713, %v712
    %v719 = vpack.c.b16 %v715, %v714
    %v725 = vsel %vm667, %v687, 0
    %727 = vmatpush.bf16.msra.mxu0 0
    %728 = vmatpush.bf16.msra.mxu0 0
    %729 = vmatpush.bf16.msra.mxu0 0
    %730 = vmatpush.bf16.msra.mxu0 0
    %731 = vmatpush.bf16.msra.mxu0 %v719
    %732 = vmatpush.bf16.msra.mxu0 %v718
    %733 = vmatpush.bf16.msra.mxu0 %v717
    %734 = vmatpush.bf16.msra.mxu0 %v716
    %735 = vmatmul.bf16.gmra.mxu0 %v725
    %v736 = vpop.f32.mrf.mxu0
    %v737 = vadd.f32 %v698, %v736
    %v738 = vpop.f32.mrf.mxu0
    %v739 = vadd.f32 %v698, %v738
    %740 = vdwg.mxu0
    %v741 = vmax.f32 %v737, 0.0
    %v742 = vmax.f32 %v739, 0.0
    %v743 = vpack.c.bf16 %v742, %v741
    %v744 = vld [vmem:[%s7] sm:$0xf]
    %v745 = vld [vmem:[%s7 + $0x4] sm:$0xf]
    %v746 = vld [vmem:[%s7 + $0x8] sm:$0xf]
    %v747 = vld [vmem:[%s7 + $0xc] sm:$0xf]
    %v748 = vld [vmem:[%s7 + $0x10] sm:$0xf]
    %v749 = vld [vmem:[%s7 + $0x14] sm:$0xf]
    %v750 = vld [vmem:[%s7 + $0x18] sm:$0xf]
    %v751 = vld [vmem:[%s7 + $0x1c] sm:$0xf]
    %v752 = vld [vmem:[%s8] sm:$0x1]
    %v754 = vperm.slane %v752, 0
    %v764 = vunpack.c.l.b16 %v744
    %v765 = vunpack.c.l.b16 %v745
    %v766 = vunpack.c.l.b16 %v746
    %v767 = vunpack.c.l.b16 %v747
    %v768 = vunpack.c.l.b16 %v748
    %v769 = vunpack.c.l.b16 %v749
    %v770 = vunpack.c.l.b16 %v750
    %v771 = vunpack.c.l.b16 %v751
    %v772 = vpack.c.b16 %v765, %v764
    %v773 = vpack.c.b16 %v767, %v766
    %v774 = vpack.c.b16 %v769, %v768
    %v775 = vpack.c.b16 %v771, %v770
    %v781 = vsel %vm667, %v743, 0
    %783 = vmatpush.bf16.msra.mxu0 0
    %784 = vmatpush.bf16.msra.mxu0 0
    %785 = vmatpush.bf16.msra.mxu0 0
    %786 = vmatpush.bf16.msra.mxu0 0
    %787 = vmatpush.bf16.msra.mxu0 %v775
    %788 = vmatpush.bf16.msra.mxu0 %v774
    %789 = vmatpush.bf16.msra.mxu0 %v773
    %790 = vmatpush.bf16.msra.mxu0 %v772
    %791 = vmatmul.bf16.gmra.mxu0 %v781
    %v792 = vpop.f32.mrf.mxu0
    %v793 = vadd.f32 %v754, %v792
    %v794 = vpop.f32.mrf.mxu0
    %v795 = vadd.f32 %v754, %v794
    %796 = vdwg.mxu0
    %797 = vst [vmem:[#allocation2] sm:$0xff] %v793
    %798 = vst [vmem:[#allocation2 + $0x8] sm:$0xff] %v795
    // Predicated region
    $region38: #{tpu_custom_call.1} parent=1 // pred_check
      _
    $region39: #{tpu_custom_call.1} parent=1 // pred_check_branch
      %800 = sbr.rel (0) target = $region41
    $region40: #{tpu_custom_call.1} parent=1 // pred_region
      %802 = vsyncadd [#allocation3], 0
      %s803 = sshll.u32 [#allocation2], 4
      %s804 = int_to_ptr.vmem [resolvable:$true] %s803
      %s805 = sshll.u32 %s9, 4
      %s806 = int_to_ptr.hbm [resolvable:$true] %s805
      %811 = dma.vmem_to_hbm [thread:$0]  %s804, 256, %s806, [#allocation3], 128, 128, 8
    $region41: #{tpu_custom_call.1} parent=1 // pred_fallthru
      _
    // Predicated region
    $region42: #{tpu_custom_call.1} parent=1 // pred_check
      _
    $region43: #{tpu_custom_call.1} parent=1 // pred_check_branch
      %813 = sbr.rel (0) target = $region45
    $region44: #{tpu_custom_call.1} parent=1 // pred_region
      %815 = dma.done [#allocation3], 256
    $region45: #{tpu_custom_call.1} parent=1 // pred_fallthru
      _
    %816 = vsyncpa [#allocation3], 1

</llo_original>
